<compile_context>
chip_gen: v7x
topology: tpu7x:2x2x1
jax: 0.10.0
libtpu: 0.0.40
codegen_flags: <defaults>
</compile_context>

<pallas_src>
import functools

import jax
import jax.numpy as jnp
from jax.experimental import pallas as pl
from jax.experimental.pallas import tpu as pltpu


# --------------------------------------------------------------------------
# Generation-aware sizing
# --------------------------------------------------------------------------
def _vmem_capacity_bytes():
    try:
        info = pltpu.get_tpu_info()
        cap = getattr(info, "vmem_capacity_bytes", None)
        if cap:
            return int(cap)
    except Exception:
        pass
    return 64 << 20  # conservative fallback: v7x per-TensorCore VMEM


def _hw_config():
    cap = _vmem_capacity_bytes()
    if cap >= (100 << 20):  # v5e / v6e class: 128 MiB VMEM
        return dict(single_limit=100 << 20, single_threshold=80 << 20,
                    blk_target_bytes=6 << 20, two_pass_limit=64 << 20)
    # v7x class: 64 MiB per TensorCore -> keep >=16 MiB compiler headroom
    return dict(single_limit=48 << 20, single_threshold=36 << 20,
                blk_target_bytes=3 << 20, two_pass_limit=40 << 20)


def _pick_hw_block(hw, c, itemsize, target_bytes):
    """Lane-dense (128-multiple) HW block sized by a VMEM byte target."""
    lanes = target_bytes // max(c * itemsize, 1)
    lanes = int(max(512, min(lanes, 8192)))
    lanes = (lanes // 128) * 128
    hw_ceil = ((hw + 127) // 128) * 128
    return int(min(lanes, hw_ceil))


# --------------------------------------------------------------------------
# Shared fused MLP (+ sigmoid): both pooling branches in one (C, 2) RHS.
# --------------------------------------------------------------------------
def _fused_mlp_sigmoid(avg, mx, w1_ref, b1_ref, w2_ref, b2_ref):
    c = avg.shape[0]
    col = jax.lax.broadcasted_iota(jnp.int32, (c, 2), 1)
    p = jnp.where(col == 0, avg, mx)                                  # (C, 2) f32
    h = jnp.dot(w1_ref[...], p, preferred_element_type=jnp.float32) + b1_ref[...]
    h = jnp.maximum(h, 0.0)                                           # ReLU
    att2 = jnp.dot(w2_ref[...], h, preferred_element_type=jnp.float32) + b2_ref[...]
    att = jnp.sum(att2, axis=-1, keepdims=True)                       # mlp(avg)+mlp(max)
    return jax.nn.sigmoid(att)                                        # (C, 1) f32


# --------------------------------------------------------------------------
# Single-pass kernel: pool + fused MLP + sigmoid + scale, one batch per step.
# --------------------------------------------------------------------------
def _fused_kernel(x_ref, w1_ref, b1_ref, w2_ref, b2_ref, o_ref, *, hw_true):
    x = x_ref[0]                                                      # (C, HW) native dtype
    avg = jnp.sum(x, axis=-1, keepdims=True, dtype=jnp.float32) * (1.0 / hw_true)
    mx = jnp.max(x, axis=-1, keepdims=True).astype(jnp.float32)
    scale = _fused_mlp_sigmoid(avg, mx, w1_ref, b1_ref, w2_ref, b2_ref)
    o_ref[0] = x * scale.astype(x.dtype)                              # stay in native dtype


def _channel_gate_single_pass(x_nchw, w1, b1, w2, b2, *, vmem_limit):
    B, C, H, W = x_nchw.shape
    HW = H * W
    hidden = w1.shape[0]
    dt = x_nchw.dtype
    itemsize = jnp.dtype(dt).itemsize

    x = x_nchw.reshape(B, C, HW)                                      # free reshape
    w1f = w1.astype(jnp.float32)
    w2f = w2.astype(jnp.float32)
    b1c = b1.reshape(hidden, 1).astype(jnp.float32)
    b2c = b2.reshape(C, 1).astype(jnp.float32)

    out = pl.pallas_call(
        functools.partial(_fused_kernel, hw_true=HW),
        out_shape=jax.ShapeDtypeStruct((B, C, HW), dt),
        grid_spec=pltpu.PrefetchScalarGridSpec(
            num_scalar_prefetch=0,
            grid=(B,),
            in_specs=[
                pl.BlockSpec((1, C, HW), lambda b: (b, 0, 0)),        # x (per-batch tile)
                pl.BlockSpec((hidden, C), lambda b: (0, 0)),          # w1
                pl.BlockSpec((hidden, 1), lambda b: (0, 0)),          # b1
                pl.BlockSpec((C, hidden), lambda b: (0, 0)),          # w2
                pl.BlockSpec((C, 1), lambda b: (0, 0)),               # b2
            ],
            out_specs=pl.BlockSpec((1, C, HW), lambda b: (b, 0, 0)),
        ),
        compiler_params=pltpu.CompilerParams(
            dimension_semantics=("parallel",),
            vmem_limit_bytes=int(vmem_limit)),
        cost_estimate=pl.CostEstimate(
            flops=int(B * (3 * C * HW + 8 * C * hidden)),
            transcendentals=int(B * C),
            bytes_accessed=int(2 * B * C * HW * itemsize)),
    )(x, w1f, b1c, w2f, b2c)

    return out.reshape(B, C, H, W)


# --------------------------------------------------------------------------
# Two-pass path.
# Pass 1: pooled stats over HW blocks, MLP + sigmoid folded into finalize.
# --------------------------------------------------------------------------
def _pool_mlp_kernel(x_ref, w1_ref, b1_ref, w2_ref, b2_ref, scale_ref,
                     sum_sc, max_sc, *, hw_true, rem):
    h = pl.program_id(1)
    last = pl.num_programs(1) - 1

    @pl.when(h == 0)
    def _():
        sum_sc[...] = jnp.zeros_like(sum_sc)
        max_sc[...] = jnp.full_like(max_sc, -jnp.inf)

    x = x_ref[0]                                  # (C, hw_blk); last block may be ragged

    def _accum(xs, xm):
        sum_sc[...] += jnp.sum(xs, axis=-1, keepdims=True, dtype=jnp.float32)
        max_sc[...] = jnp.maximum(
            max_sc[...], jnp.max(xm, axis=-1, keepdims=True).astype(jnp.float32))

    if rem:
        # Only the final block is ragged: mask (sum AND max) there, full-speed elsewhere.
        @pl.when(h != last)
        def _():
            _accum(x, x)

        @pl.when(h == last)
        def _():
            lane = jax.lax.broadcasted_iota(jnp.int32, x.shape, 1)
            valid = lane < rem
            zero = jnp.zeros((), dtype=x.dtype)
            neg = jnp.asarray(jnp.finfo(x.dtype).min, dtype=x.dtype)  # dtype-matched fill
            _accum(jnp.where(valid, x, zero), jnp.where(valid, x, neg))
    else:
        _accum(x, x)

    @pl.when(h == last)
    def _():
        avg = sum_sc[...] * (1.0 / hw_true)       # divide by the TRUE spatial size
        scale_ref[0] = _fused_mlp_sigmoid(avg, max_sc[...],
                                          w1_ref, b1_ref, w2_ref, b2_ref)


# Pass 2: streaming scale-apply (fully parallel grid).
def _scale_kernel(scale_ref, x_ref, o_ref):
    x = x_ref[0]                                  # (C, hw_blk) native dtype
    o_ref[0] = x * scale_ref[0].astype(x.dtype)


def _channel_gate_two_pass(x_nchw, w1, b1, w2, b2, *, block_lanes=None):
    B, C, H, W = x_nchw.shape
    HW = H * W
    dt = x_nchw.dtype
    itemsize = jnp.dtype(dt).itemsize
    hidden = w1.shape[0]
    cfg = _hw_config()

    x = x_nchw.reshape(B, C, HW)                  # free reshape; NO HBM pad round-trip
    hw_blk = block_lanes if block_lanes is not None else _pick_hw_block(
        HW, C, itemsize, cfg["blk_target_bytes"])
    n_hw = (HW + hw_blk - 1) // hw_blk
    rem = HW % hw_blk                             # ragged last block (0 => dense)

    w1f = w1.astype(jnp.float32)
    w2f = w2.astype(jnp.float32)
    b1c = b1.reshape(hidden, 1).astype(jnp.float32)
    b2c = b2.reshape(C, 1).astype(jnp.float32)

    # ---- pass 1: pooled stats + fused MLP + sigmoid -> scale (B, C, 1) f32 ----
    scale = pl.pallas_call(
        functools.partial(_pool_mlp_kernel, hw_true=HW, rem=rem),
        out_shape=jax.ShapeDtypeStruct((B, C, 1), jnp.float32),
        grid_spec=pltpu.PrefetchScalarGridSpec(
            num_scalar_prefetch=0,
            grid=(B, n_hw),
            in_specs=[
                pl.BlockSpec((1, C, hw_blk), lambda b, h: (b, 0, h)),  # x
                pl.BlockSpec((hidden, C), lambda b, h: (0, 0)),        # w1 (index-invariant)
                pl.BlockSpec((hidden, 1), lambda b, h: (0, 0)),        # b1
                pl.BlockSpec((C, hidden), lambda b, h: (0, 0)),        # w2
                pl.BlockSpec((C, 1), lambda b, h: (0, 0)),             # b2
            ],
            out_specs=pl.BlockSpec((1, C, 1), lambda b, h: (b, 0, 0)),
            scratch_shapes=[pltpu.VMEM((C, 1), jnp.float32),           # running sum
                            pltpu.VMEM((C, 1), jnp.float32)],          # running max
        ),
        compiler_params=pltpu.CompilerParams(
            dimension_semantics=("parallel", "arbitrary"),
            vmem_limit_bytes=cfg["two_pass_limit"]),
        cost_estimate=pl.CostEstimate(
            flops=int(2 * B * C * HW + 8 * B * C * hidden),
            transcendentals=int(B * C),
            bytes_accessed=int(B * C * HW * itemsize)),
    )(x, w1f, b1c, w2f, b2c)

    # ---- pass 2: apply scale; ragged last-block writes are masked by Pallas ----
    out = pl.pallas_call(
        _scale_kernel,
        out_shape=jax.ShapeDtypeStruct((B, C, HW), dt),
        grid_spec=pltpu.PrefetchScalarGridSpec(
            num_scalar_prefetch=0,
            grid=(B, n_hw),
            in_specs=[
                # h-invariant index_map: scale fetched once per batch, not per block.
                pl.BlockSpec((1, C, 1), lambda b, h: (b, 0, 0)),
                pl.BlockSpec((1, C, hw_blk), lambda b, h: (b, 0, h)),
            ],
            out_specs=pl.BlockSpec((1, C, hw_blk), lambda b, h: (b, 0, h)),
        ),
        compiler_params=pltpu.CompilerParams(
            dimension_semantics=("parallel", "parallel"),
            vmem_limit_bytes=cfg["two_pass_limit"]),
        cost_estimate=pl.CostEstimate(
            flops=int(B * C * HW),
            transcendentals=0,
            bytes_accessed=int(2 * B * C * HW * itemsize)),
    )(scale, x)

    return out.reshape(B, C, H, W)                # free reshape; NO slice round-trip


# --------------------------------------------------------------------------
# Public wrapper: generation-aware dispatch.
# --------------------------------------------------------------------------
def channel_gate(x_nchw, w1, b1, w2, b2, *, force_two_pass=False):
    """x_nchw: (B, C, H, W), any float dtype.  PyTorch nn.Linear weight layout:
       w1: (C//r, C), b1: (C//r,), w2: (C, C//r), b2: (C,)."""
    B, C, H, W = x_nchw.shape
    HW = H * W
    itemsize = jnp.dtype(x_nchw.dtype).itemsize
    cfg = _hw_config()
    single_pass_bytes = 4 * C * HW * itemsize     # in + out blocks, double-buffered
    fits = single_pass_bytes <= cfg["single_threshold"]
    # Small-B guard: with grid=(B,) and tiny B the single-pass pipeline has too few
    # steps to hide DMA (and starves one v7x TensorCore); prefer the tiled two-pass
    # path unless the per-batch tile is small enough that launch overhead dominates.
    tiny_tile = single_pass_bytes <= (4 << 20)
    if force_two_pass or not fits or (B < 4 and not tiny_tile):
        return _channel_gate_two_pass(x_nchw, w1, b1, w2, b2)
    return _channel_gate_single_pass(x_nchw, w1, b1, w2, b2,
                                     vmem_limit=cfg["single_limit"])


def channel_gate_reference(x, w1, b1, w2, b2):
    """Pure-JAX reference mirroring the PyTorch forward (f32 math)."""
    def mlp(p):  # p: (B, C)
        h = jnp.maximum(p @ w1.T + b1, 0.0)
        return h @ w2.T + b2

    avg_pool = jnp.mean(x, axis=(2, 3))
    max_pool = jnp.max(x, axis=(2, 3))
    att = mlp(avg_pool) + mlp(max_pool)
    scale = jax.nn.sigmoid(att)[:, :, None, None]
    return x * scale


if __name__ == "__main__":
    # reduction_ratio=16 => base >= 16.
    B, C, H, W = 2, 32, 16, 16
    reduction_ratio = 16
    hidden = C // reduction_ratio

    key = jax.random.PRNGKey(0)
    kx, k1, k2, k3, k4, kx2 = jax.random.split(key, 6)

    x = jax.random.normal(kx, (B, C, H, W), dtype=jnp.float32)
    w1 = jax.random.normal(k1, (hidden, C), dtype=jnp.float32) * 0.1
    b1 = jax.random.normal(k2, (hidden,), dtype=jnp.float32) * 0.1
    w2 = jax.random.normal(k3, (C, hidden), dtype=jnp.float32) * 0.1
    b2 = jax.random.normal(k4, (C,), dtype=jnp.float32) * 0.1

    ref = channel_gate_reference(x, w1, b1, w2, b2)

    # 1) dispatcher path (single-pass for this small tile), f32
    out = jax.block_until_ready(channel_gate(x, w1, b1, w2, b2))
    assert out.shape == (B, C, H, W)
    assert jnp.allclose(out, ref, atol=1e-5, rtol=1e-5), "single-pass f32 mismatch"

    # 2) native bf16 activations (bytes-halved DMA path)
    x_bf16 = x.astype(jnp.bfloat16)
    ref_bf = channel_gate_reference(x_bf16.astype(jnp.float32), w1, b1, w2, b2)
    out_bf = jax.block_until_ready(channel_gate(x_bf16, w1, b1, w2, b2))
    assert out_bf.dtype == jnp.bfloat16
    assert jnp.allclose(out_bf.astype(jnp.float32), ref_bf, atol=5e-2, rtol=5e-2), \
        "single-pass bf16 mismatch"

    # 3) two-pass path, ragged HW (12*12=144, not a 128 multiple), forced small blocks:
    #    exercises multi-block accumulation, last-block sum+max masking, and masked
    #    ragged output writes (no HBM pad / slice round-trips).
    H2 = W2 = 12
    x2 = jax.random.normal(kx2, (B, C, H2, W2), dtype=jnp.float32)
    ref2 = channel_gate_reference(x2, w1, b1, w2, b2)
    out2 = jax.block_until_ready(
        _channel_gate_two_pass(x2, w1, b1, w2, b2, block_lanes=128))
    assert out2.shape == (B, C, H2, W2)
    assert jnp.allclose(out2, ref2, atol=1e-5, rtol=1e-5), "two-pass ragged mismatch"

    # 4) two-pass path with default byte-target block sizing on the dense shape
    out3 = jax.block_until_ready(_channel_gate_two_pass(x, w1, b1, w2, b2))
    assert jnp.allclose(out3, ref, atol=1e-5, rtol=1e-5), "two-pass dense mismatch"

    # 5) single-pass path on the non-128-multiple HW (full-extent block)
    out4 = jax.block_until_ready(channel_gate(x2, w1, b1, w2, b2))
    assert jnp.allclose(out4, ref2, atol=1e-5, rtol=1e-5), "single-pass ragged mismatch"

    print("KERNEL_OK")
</pallas_src>

<mosaic_0001>
module attributes {stable_mosaic.version = 11 : i64} {
  func.func @_fused_kernel(%arg0: i32, %arg1: memref<1x32x256xf32, #tpu.memory_space<vmem>>, %arg2: memref<2x32xf32, #tpu.memory_space<vmem>>, %arg3: memref<2x1xf32, #tpu.memory_space<vmem>>, %arg4: memref<32x2xf32, #tpu.memory_space<vmem>>, %arg5: memref<32x1xf32, #tpu.memory_space<vmem>>, %arg6: memref<1x32x256xf32, #tpu.memory_space<vmem>>) attributes {dimension_semantics = [#tpu.dimension_semantics<parallel>], iteration_bounds = array<i64: 2>, scalar_prefetch = 0 : i64, scratch_operands = 0 : i64, tpu.core_type = #tpu.core_type<tc>, window_params = [{transform_indices = @transform_0, window_bounds = array<i64: 1, 32, 256>}, {pipeline_mode = #tpu.pipeline_mode<synchronous>, transform_indices = @transform_1, window_bounds = array<i64: 2, 32>}, {pipeline_mode = #tpu.pipeline_mode<synchronous>, transform_indices = @transform_2, window_bounds = array<i64: 2, 1>}, {pipeline_mode = #tpu.pipeline_mode<synchronous>, transform_indices = @transform_3, window_bounds = array<i64: 32, 2>}, {pipeline_mode = #tpu.pipeline_mode<synchronous>, transform_indices = @transform_4, window_bounds = array<i64: 32, 1>}, {transform_indices = @transform_5, window_bounds = array<i64: 1, 32, 256>}]} {
    %c0 = arith.constant 0 : index
    %c0_0 = arith.constant 0 : index
    %c0_1 = arith.constant 0 : index
    %0 = vector.load %arg1[%c0, %c0_0, %c0_1] : memref<1x32x256xf32, #tpu.memory_space<vmem>>, vector<1x32x256xf32>
    %1 = vector.shape_cast %0 : vector<1x32x256xf32> to vector<32x256xf32>
    %cst = arith.constant dense<0.000000e+00> : vector<32xf32>
    %2 = vector.multi_reduction <add>, %1, %cst [1] : vector<32x256xf32> to vector<32xf32>
    %3 = vector.shape_cast %2 : vector<32xf32> to vector<32x1xf32>
    %cst_2 = arith.constant 3.906250e-03 : f32
    %4 = vector.broadcast %cst_2 : f32 to vector<32x1xf32>
    %5 = arith.mulf %3, %4 : vector<32x1xf32>
    %cst_3 = arith.constant dense<0xFF800000> : vector<32xf32>
    %6 = vector.multi_reduction <maximumf>, %1, %cst_3 [1] : vector<32x256xf32> to vector<32xf32>
    %7 = vector.shape_cast %6 : vector<32xf32> to vector<32x1xf32>
    %8 = tpu.iota {dimensions = array<i32: 1>} : vector<32x2xi32>
    %c0_i32 = arith.constant 0 : i32
    %9 = vector.broadcast %c0_i32 : i32 to vector<32x2xi32>
    %10 = arith.cmpi eq, %8, %9 : vector<32x2xi32>
    %11 = vector.shape_cast %5 : vector<32x1xf32> to vector<32x1xf32>
    %12 = vector.broadcast %11 : vector<32x1xf32> to vector<32x2xf32>
    %13 = vector.shape_cast %7 : vector<32x1xf32> to vector<32x1xf32>
    %14 = vector.broadcast %13 : vector<32x1xf32> to vector<32x2xf32>
    %15 = arith.select %10, %12, %14 : vector<32x2xi1>, vector<32x2xf32>
    %c0_4 = arith.constant 0 : index
    %c0_5 = arith.constant 0 : index
    %16 = vector.load %arg2[%c0_4, %c0_5] : memref<2x32xf32, #tpu.memory_space<vmem>>, vector<2x32xf32>
    %cst_6 = arith.constant dense<0.000000e+00> : vector<2x2xf32>
    %17 = tpu.matmul %16, %15, %cst_6 {dimension_numbers = #tpu.dot_dimension_numbers<[1], [0], [0], [1], [0, 0, 1, 1], [], []>} : vector<2x32xf32>, vector<32x2xf32>, vector<2x2xf32> -> vector<2x2xf32>
    %c0_7 = arith.constant 0 : index
    %c0_8 = arith.constant 0 : index
    %18 = vector.load %arg3[%c0_7, %c0_8] : memref<2x1xf32, #tpu.memory_space<vmem>>, vector<2x1xf32>
    %19 = vector.broadcast %18 : vector<2x1xf32> to vector<2x2xf32>
    %20 = arith.addf %17, %19 : vector<2x2xf32>
    %cst_9 = arith.constant 0.000000e+00 : f32
    %21 = vector.broadcast %cst_9 : f32 to vector<2x2xf32>
    %22 = arith.maximumf %20, %21 : vector<2x2xf32>
    %c0_10 = arith.constant 0 : index
    %c0_11 = arith.constant 0 : index
    %23 = vector.load %arg4[%c0_10, %c0_11] : memref<32x2xf32, #tpu.memory_space<vmem>>, vector<32x2xf32>
    %cst_12 = arith.constant dense<0.000000e+00> : vector<32x2xf32>
    %24 = tpu.matmul %23, %22, %cst_12 {dimension_numbers = #tpu.dot_dimension_numbers<[1], [0], [0], [1], [0, 0, 1, 1], [], []>} : vector<32x2xf32>, vector<2x2xf32>, vector<32x2xf32> -> vector<32x2xf32>
    %c0_13 = arith.constant 0 : index
    %c0_14 = arith.constant 0 : index
    %25 = vector.load %arg5[%c0_13, %c0_14] : memref<32x1xf32, #tpu.memory_space<vmem>>, vector<32x1xf32>
    %26 = vector.broadcast %25 : vector<32x1xf32> to vector<32x2xf32>
    %27 = arith.addf %24, %26 : vector<32x2xf32>
    %cst_15 = arith.constant dense<0.000000e+00> : vector<32xf32>
    %28 = vector.multi_reduction <add>, %27, %cst_15 [1] : vector<32x2xf32> to vector<32xf32>
    %29 = vector.shape_cast %28 : vector<32xf32> to vector<32x1xf32>
    %30 = arith.negf %29 : vector<32x1xf32>
    %31 = math.exp %30 : vector<32x1xf32>
    %cst_16 = arith.constant 1.000000e+00 : f32
    %32 = vector.broadcast %cst_16 : f32 to vector<32x1xf32>
    %33 = arith.addf %32, %31 : vector<32x1xf32>
    %34 = arith.divf %32, %33 : vector<32x1xf32>
    %35 = vector.broadcast %34 : vector<32x1xf32> to vector<32x256xf32>
    %36 = arith.mulf %1, %35 : vector<32x256xf32>
    %c0_17 = arith.constant 0 : index
    %c0_18 = arith.constant 0 : index
    %c0_19 = arith.constant 0 : index
    %37 = vector.load %arg6[%c0_17, %c0_18, %c0_19] : memref<1x32x256xf32, #tpu.memory_space<vmem>>, vector<1x32x256xf32>
    %38 = vector.shape_cast %37 : vector<1x32x256xf32> to vector<32x256xf32>
    %39 = vector.shape_cast %36 : vector<32x256xf32> to vector<1x32x256xf32>
    tpu.vector_store %arg6[%c0_17, %c0_18, %c0_19], %39 {strides = array<i32>} : memref<1x32x256xf32, #tpu.memory_space<vmem>>, vector<1x32x256xf32>,
    return
  }
  func.func @transform_0(%arg0: i32) -> (i32, i32, i32) {
    %c0_i32 = arith.constant 0 : i32
    %c0_i32_0 = arith.constant 0 : i32
    %c0_i32_1 = arith.constant 0 : i32
    return %arg0, %c0_i32, %c0_i32_0 : i32, i32, i32
  }
  func.func @transform_1(%arg0: i32) -> (i32, i32) {
    %c0_i32 = arith.constant 0 : i32
    %c0_i32_0 = arith.constant 0 : i32
    %c0_i32_1 = arith.constant 0 : i32
    return %c0_i32, %c0_i32_0 : i32, i32
  }
  func.func @transform_2(%arg0: i32) -> (i32, i32) {
    %c0_i32 = arith.constant 0 : i32
    %c0_i32_0 = arith.constant 0 : i32
    %c0_i32_1 = arith.constant 0 : i32
    return %c0_i32, %c0_i32_0 : i32, i32
  }
  func.func @transform_3(%arg0: i32) -> (i32, i32) {
    %c0_i32 = arith.constant 0 : i32
    %c0_i32_0 = arith.constant 0 : i32
    %c0_i32_1 = arith.constant 0 : i32
    return %c0_i32, %c0_i32_0 : i32, i32
  }
  func.func @transform_4(%arg0: i32) -> (i32, i32) {
    %c0_i32 = arith.constant 0 : i32
    %c0_i32_0 = arith.constant 0 : i32
    %c0_i32_1 = arith.constant 0 : i32
    return %c0_i32, %c0_i32_0 : i32, i32
  }
  func.func @transform_5(%arg0: i32) -> (i32, i32, i32) {
    %c0_i32 = arith.constant 0 : i32
    %c0_i32_0 = arith.constant 0 : i32
    %c0_i32_1 = arith.constant 0 : i32
    return %arg0, %c0_i32, %c0_i32_0 : i32, i32, i32
  }
}

</mosaic_0001>

<llo_original>
// kernel: tpu_custom_call.1
$region0: #{tpu_custom_call.1}
  #allocation0 [shape = 'u32[]', space=smem, size = 0x4, offset = 0x4, fixed_abs, tag = 'smem constant byte address 0x4 - core index']
  #allocation1 [shape = 'u32[144,128]{1,0:T(1,128)}', space=vmem, size = 0x12000, scoped, tag = 'internal scratch']
  %s0 = inlined_call_operand.hbm [shape: f32[2,32,256], index: 0, kind: input, shape index: {}]
  %s1 = inlined_call_operand.vmem [shape: f32[2,32], index: 1, kind: input, shape index: {}]
  %s2 = inlined_call_operand.vmem [shape: f32[2,1], index: 2, kind: input, shape index: {}]
  %s3 = inlined_call_operand.vmem [shape: f32[32,2], index: 3, kind: input, shape index: {}]
  %s4 = inlined_call_operand.vmem [shape: f32[32,1], index: 4, kind: input, shape index: {}]
  %s5 = inlined_call_operand.hbm [shape: f32[2,32,256], index: 5, kind: output, shape index: {}]
  %s6 = sld [smem:[#allocation0]]
  $region57: #{tpu_custom_call.1} parent=0
    _
  %s8 = ssub.s32 1, %s6
  %s9 = scalar_select 0, %s8, %s6
  $region1: #{tpu_custom_call.1} parent=0
    #allocation2 [shape = 'u8[65536]{0}', space=vmem, size = 0x10000, scoped, tag = 'input window, operand 0']
    #allocation3 [shape = 's32[2]{0}', space=sflag, size = 0x8, scoped, tag = 'scoped memory for tpu_custom_call.1']
    #allocation4 [shape = 's32[2]{0}', space=sflag, size = 0x8, scoped, tag = 'scoped memory for tpu_custom_call.1']
    #allocation5 [shape = 'u8[65536]{0}', space=vmem, size = 0x10000, scoped, tag = 'output window, operand 0']
    %10 = vsyncpa [#allocation3], 0
    %s11 = scalar_lea.sflag [#allocation3], 1
    %12 = vsyncpa %s11, 0
    %13 = vsyncpa [#allocation4], 0
    %s14 = scalar_lea.sflag [#allocation4], 1
    %15 = vsyncpa %s14, 0
    loop: start=0, step=1, limit=4
    $region2: #{tpu_custom_call.1} parent=1 // loop_pre_header
      _
    $region3: #{tpu_custom_call.1} parent=1 // loop_header
      %s17 = sphi 0, %s21
      %p18 = scmp.ge.s32.totalorder %s17, 4
      %s27 = sphi 0, %s29
      %s30 = sphi 0, %s27
      %s31 = sphi 0, %s30
      %s47 = sphi 0, %s31
      %s51 = sphi 0, %s51
      %s53 = sphi 0, %s51
      %s54 = sphi 0, %s53
      %s68 = sphi 0, %s54
      %s72 = sphi 0, %s72
      %s74 = sphi 0, %s72
      %s75 = sphi 0, %s74
      %s89 = sphi 0, %s75
      %s93 = sphi 0, %s93
      %s95 = sphi 0, %s93
      %s96 = sphi 0, %s95
      %s110 = sphi 0, %s96
      %s114 = sphi 0, %s114
      %s116 = sphi 0, %s114
      %s117 = sphi 0, %s116
      %s131 = sphi 0, %s117
      %s137 = sphi 0, %s139
      %s140 = sphi 0, %s137
      %s141 = sphi 0, %s140
      %s157 = sphi 0, %s141
    $region4: #{tpu_custom_call.1} parent=1 // loop_header_branch
      %20 = sbr.rel (%p18) target = $region8
    $region5: #{tpu_custom_call.1} parent=1 // loop_body
      %s22 = ssub.s32 %s17, 1
      %s23 = ssub.s32 %s17, 2
      %s24 = sadd.s32 %s17, 1
      %s25 = ssub.s32 %s17, %s24
      %p26 = scmp.eq.s32.totalorder %s25, 0
      %s28 = sadd.s32 %s27, 1
      %s29 = scalar_select %p26, %s27, %s28
      %p32 = pneg %p26
      %p33 = scmp.eq.s32.totalorder %s17, 1
      %p34 = por %p32, %p33
      %p35 = scmp.ne.s32.totalorder %s27, %s30
      %p36 = scmp.eq.s32.totalorder %s17, 0
      %p37 = por %p35, %p36
      %p38 = scmp.ne.s32.totalorder %s27, %s30
      %p39 = scmp.eq.s32.totalorder %s22, 1
      %p40 = por %p38, %p39
      %p41 = scmp.ne.s32.totalorder %s30, %s31
      %p42 = scmp.eq.s32.totalorder %s22, 0
      %p43 = por %p41, %p42
      %p44 = scmp.ne.s32.totalorder %s30, %s31
      %p45 = scmp.eq.s32.totalorder %s23, 1
      %p46 = por %p44, %p45
      %p48 = scmp.ne.s32.totalorder %s31, %s47
      %p49 = scmp.eq.s32.totalorder %s23, 0
      %p50 = por %p48, %p49
      %s52 = sadd.s32 %s51, 1
      %p55 = scmp.eq.s32.totalorder %s17, 1
      %p56 = scmp.ne.s32.totalorder %s51, %s53
      %p57 = scmp.eq.s32.totalorder %s17, 0
      %p58 = por %p56, %p57
      %p59 = scmp.ne.s32.totalorder %s51, %s53
      %p60 = scmp.eq.s32.totalorder %s22, 1
      %p61 = por %p59, %p60
      %p62 = scmp.ne.s32.totalorder %s53, %s54
      %p63 = scmp.eq.s32.totalorder %s22, 0
      %p64 = por %p62, %p63
      %p65 = scmp.ne.s32.totalorder %s53, %s54
      %p66 = scmp.eq.s32.totalorder %s23, 1
      %p67 = por %p65, %p66
      %p69 = scmp.ne.s32.totalorder %s54, %s68
      %p70 = scmp.eq.s32.totalorder %s23, 0
      %p71 = por %p69, %p70
      %s73 = sadd.s32 %s72, 1
      %p76 = scmp.eq.s32.totalorder %s17, 1
      %p77 = scmp.ne.s32.totalorder %s72, %s74
      %p78 = scmp.eq.s32.totalorder %s17, 0
      %p79 = por %p77, %p78
      %p80 = scmp.ne.s32.totalorder %s72, %s74
      %p81 = scmp.eq.s32.totalorder %s22, 1
      %p82 = por %p80, %p81
      %p83 = scmp.ne.s32.totalorder %s74, %s75
      %p84 = scmp.eq.s32.totalorder %s22, 0
      %p85 = por %p83, %p84
      %p86 = scmp.ne.s32.totalorder %s74, %s75
      %p87 = scmp.eq.s32.totalorder %s23, 1
      %p88 = por %p86, %p87
      %p90 = scmp.ne.s32.totalorder %s75, %s89
      %p91 = scmp.eq.s32.totalorder %s23, 0
      %p92 = por %p90, %p91
      %s94 = sadd.s32 %s93, 1
      %p97 = scmp.eq.s32.totalorder %s17, 1
      %p98 = scmp.ne.s32.totalorder %s93, %s95
      %p99 = scmp.eq.s32.totalorder %s17, 0
      %p100 = por %p98, %p99
      %p101 = scmp.ne.s32.totalorder %s93, %s95
      %p102 = scmp.eq.s32.totalorder %s22, 1
      %p103 = por %p101, %p102
      %p104 = scmp.ne.s32.totalorder %s95, %s96
      %p105 = scmp.eq.s32.totalorder %s22, 0
      %p106 = por %p104, %p105
      %p107 = scmp.ne.s32.totalorder %s95, %s96
      %p108 = scmp.eq.s32.totalorder %s23, 1
      %p109 = por %p107, %p108
      %p111 = scmp.ne.s32.totalorder %s96, %s110
      %p112 = scmp.eq.s32.totalorder %s23, 0
      %p113 = por %p111, %p112
      %s115 = sadd.s32 %s114, 1
      %p118 = scmp.eq.s32.totalorder %s17, 1
      %p119 = scmp.ne.s32.totalorder %s114, %s116
      %p120 = scmp.eq.s32.totalorder %s17, 0
      %p121 = por %p119, %p120
      %p122 = scmp.ne.s32.totalorder %s114, %s116
      %p123 = scmp.eq.s32.totalorder %s22, 1
      %p124 = por %p122, %p123
      %p125 = scmp.ne.s32.totalorder %s116, %s117
      %p126 = scmp.eq.s32.totalorder %s22, 0
      %p127 = por %p125, %p126
      %p128 = scmp.ne.s32.totalorder %s116, %s117
      %p129 = scmp.eq.s32.totalorder %s23, 1
      %p130 = por %p128, %p129
      %p132 = scmp.ne.s32.totalorder %s117, %s131
      %p133 = scmp.eq.s32.totalorder %s23, 0
      %p134 = por %p132, %p133
      %s135 = ssub.s32 %s17, %s24
      %p136 = scmp.eq.s32.totalorder %s135, 0
      %s138 = sadd.s32 %s137, 1
      %s139 = scalar_select %p136, %s137, %s138
      %p142 = pneg %p136
      %p143 = scmp.eq.s32.totalorder %s17, 1
      %p144 = por %p142, %p143
      %p145 = scmp.ne.s32.totalorder %s137, %s140
      %p146 = scmp.eq.s32.totalorder %s17, 0
      %p147 = por %p145, %p146
      %p148 = scmp.ne.s32.totalorder %s137, %s140
      %p149 = scmp.eq.s32.totalorder %s22, 1
      %p150 = por %p148, %p149
      %p151 = scmp.ne.s32.totalorder %s140, %s141
      %p152 = scmp.eq.s32.totalorder %s22, 0
      %p153 = por %p151, %p152
      %p154 = scmp.ne.s32.totalorder %s140, %s141
      %p155 = scmp.eq.s32.totalorder %s23, 1
      %p156 = por %p154, %p155
      %p158 = scmp.ne.s32.totalorder %s141, %s157
      %p159 = scmp.eq.s32.totalorder %s23, 0
      %p160 = por %p158, %p159
      %p161 = scmp.le.s32.totalorder 1, %s17
      %p162 = scmp.lt.s32.totalorder %s17, 3
      %p163 = pnand %p161, %p162
      %p164 = pneg %p163
      // Predicated region
      $region9: #{tpu_custom_call.1} parent=5 // pred_check
        _
      $region10: #{tpu_custom_call.1} parent=5 // pred_check_branch
        %166 = sbr.rel (%p163) target = $region12
      $region11: #{tpu_custom_call.1} parent=5 // pred_region
        %s167 = ssub.s32 %s17, 1
        // Predicated region
        $region13: #{tpu_custom_call.1} parent=11 // pred_check
          %p168 = pneg %p64
        $region14: #{tpu_custom_call.1} parent=11 // pred_check_branch
          %170 = sbr.rel (%p168) target = $region16
        $region15: #{tpu_custom_call.1} parent=11 // pred_region
          _
        $region16: #{tpu_custom_call.1} parent=11 // pred_fallthru
          _
        // Predicated region
        $region17: #{tpu_custom_call.1} parent=11 // pred_check
          %p171 = pneg %p85
        $region18: #{tpu_custom_call.1} parent=11 // pred_check_branch
          %173 = sbr.rel (%p171) target = $region20
        $region19: #{tpu_custom_call.1} parent=11 // pred_region
          _
        $region20: #{tpu_custom_call.1} parent=11 // pred_fallthru
          _
        // Predicated region
        $region21: #{tpu_custom_call.1} parent=11 // pred_check
          %p174 = pneg %p106
        $region22: #{tpu_custom_call.1} parent=11 // pred_check_branch
          %176 = sbr.rel (%p174) target = $region24
        $region23: #{tpu_custom_call.1} parent=11 // pred_region
          _
        $region24: #{tpu_custom_call.1} parent=11 // pred_fallthru
          _
        // Predicated region
        $region25: #{tpu_custom_call.1} parent=11 // pred_check
          %p177 = pneg %p127
        $region26: #{tpu_custom_call.1} parent=11 // pred_check_branch
          %179 = sbr.rel (%p177) target = $region28
        $region27: #{tpu_custom_call.1} parent=11 // pred_region
          _
        $region28: #{tpu_custom_call.1} parent=11 // pred_fallthru
          _
      $region12: #{tpu_custom_call.1} parent=5 // pred_fallthru
        _
      %p180 = scmp.lt.s32.totalorder %s17, 2
      // Predicated region
      $region29: #{tpu_custom_call.1} parent=5 // pred_check
        %p181 = pneg %p180
      $region30: #{tpu_custom_call.1} parent=5 // pred_check_branch
        %183 = sbr.rel (%p181) target = $region32
      $region31: #{tpu_custom_call.1} parent=5 // pred_region
        // Predicated region
        $region33: #{tpu_custom_call.1} parent=31 // pred_check
          %p184 = pneg %p37
        $region34: #{tpu_custom_call.1} parent=31 // pred_check_branch
          %186 = sbr.rel (%p184) target = $region36
        $region35: #{tpu_custom_call.1} parent=31 // pred_region
          %s187 = sand.u32 %s27, 1
          %s188 = scalar_lea.sflag [#allocation3], %s187
          %s189 = sand.u32 %s27, 1
          %s190 = smul.addr %s189, 64
          %s191 = scalar_lea.vmem [#allocation2], %s190
          %s193 = ssub.s32 1024, 1024
          %194 = vsyncadd %s188, %s193
          %s195 = smul.addr %s17, 8
          %s196 = smul.addr %s195, 128
          %s197 = scalar_lea.hbm %s0, %s196
          %s198 = sshll.u32 %s191, 4
          %s199 = int_to_ptr.vmem [resolvable:$true] %s198
          %204 = dma.hbm_to_vmem [thread:$0]  %s197, 1024, %s199, %s188, 256, 256, 16
        $region36: #{tpu_custom_call.1} parent=31 // pred_fallthru
          _
      $region32: #{tpu_custom_call.1} parent=5 // pred_fallthru
        _
      %p205 = scmp.le.s32.totalorder 1, %s17
      %p206 = scmp.lt.s32.totalorder %s17, 3
      %p207 = pnand %p205, %p206
      %p208 = pneg %p207
      // Predicated region
      $region37: #{tpu_custom_call.1} parent=5 // pred_check
        _
      $region38: #{tpu_custom_call.1} parent=5 // pred_check_branch
        %210 = sbr.rel (%p207) target = $region40
      $region39: #{tpu_custom_call.1} parent=5 // pred_region
        %s211 = ssub.s32 %s17, 1
        %s212 = sand.u32 %s30, 1
        %s213 = scalar_lea.sflag [#allocation3], %s212
        %s214 = sand.u32 %s30, 1
        %s215 = smul.addr %s214, 64
        %s216 = scalar_lea.vmem [#allocation2], %s215
        // Predicated region
        $region41: #{tpu_custom_call.1} parent=39 // pred_check
          %p217 = pneg %p43
        $region42: #{tpu_custom_call.1} parent=39 // pred_check_branch
          %219 = sbr.rel (%p217) target = $region44
        $region43: #{tpu_custom_call.1} parent=39 // pred_region
          %220 = dma.done %s213, 1024
        $region44: #{tpu_custom_call.1} parent=39 // pred_fallthru
          _
        %s221 = sand.u32 %s30, 1
        %s222 = scalar_lea.sflag [#allocation3], %s221
        %s223 = sand.u32 %s30, 1
        %s224 = smul.addr %s223, 64
        %s225 = scalar_lea.vmem [#allocation2], %s224
        %p226 = pneg %p43
        %p227 = pneg %p40
        %p228 = pneg %p64
        %p229 = pneg %p61
        %p230 = pneg %p85
        %p231 = pneg %p82
        %p232 = pneg %p106
        %p233 = pneg %p103
        %p234 = pneg %p127
        %p235 = pneg %p124
        %p236 = pneg %p153
        %p237 = pneg %p150
        %s238 = sand.u32 %s140, 1
        %s239 = scalar_lea.sflag [#allocation4], %s238
        %s240 = sand.u32 %s140, 1
        %s241 = smul.addr %s240, 64
        %s242 = scalar_lea.vmem [#allocation5], %s241
        %v243 = vld [vmem:[%s216] sm:$0xff]
        %v244 = vld [vmem:[%s216 + $0x8] sm:$0xff]
        %v245 = vld [vmem:[%s216 + $0x10] sm:$0xff]
        %v246 = vld [vmem:[%s216 + $0x18] sm:$0xff]
        %v247 = vld [vmem:[%s216 + $0x20] sm:$0xff]
        %v248 = vld [vmem:[%s216 + $0x28] sm:$0xff]
        %v249 = vld [vmem:[%s216 + $0x30] sm:$0xff]
        %v250 = vld [vmem:[%s216 + $0x38] sm:$0xff]
        %v251 = vadd.f32 %v243, %v244
        %252 = vadd.xlane.f32.xlu0 %v251
        %v253 = vpop.xlane.xlu0 %252
        %v254 = vadd.f32 %v245, %v246
        %255 = vadd.xlane.f32.xlu0 %v254
        %v256 = vpop.xlane.xlu0 %255
        %v257 = vadd.f32 %v247, %v248
        %258 = vadd.xlane.f32.xlu0 %v257
        %v259 = vpop.xlane.xlu0 %258
        %v260 = vadd.f32 %v249, %v250
        %261 = vadd.xlane.f32.xlu0 %v260
        %v262 = vpop.xlane.xlu0 %261
        %v263 = vmul.f32 %v253, 0.00390625
        %v264 = vmul.f32 %v256, 0.00390625
        %v265 = vmul.f32 %v259, 0.00390625
        %v266 = vmul.f32 %v262, 0.00390625
        %v267 = vmax.f32 %v243, %v244
        %268 = vmax.xlane.f32.xlu0 %v267
        %v269 = vpop.xlane.xlu0 %268
        %v270 = vmax.f32 %v245, %v246
        %271 = vmax.xlane.f32.xlu0 %v270
        %v272 = vpop.xlane.xlu0 %271
        %v273 = vmax.f32 %v247, %v248
        %274 = vmax.xlane.f32.xlu0 %v273
        %v275 = vpop.xlane.xlu0 %274
        %v276 = vmax.f32 %v249, %v250
        %277 = vmax.xlane.f32.xlu0 %v276
        %v278 = vpop.xlane.xlu0 %277
        %v279 = vlaneseq
        %v280 = vand.u32 %v279, 127
        %vm281 = vcmp.eq.s32.totalorder %v280, 0
        %v282 = vsel %vm281, %v263, %v269
        %v283 = vsel %vm281, %v264, %v272
        %v284 = vsel %vm281, %v265, %v275
        %v285 = vsel %vm281, %v266, %v278
        %v286 = vld [vmem:[%s1] sm:$0x3]
        %v287 = vld [vmem:[%s2] sm:$0x3]
        %289 = vset.pattern.permute.xlu0 0
        %290 = vperm.xlu0 %289, %v287
        %v291 = vpop.permute.xlu0 %290
        %vm293 = vcmask 261120
        %v295 = vsel %vm293, %v286, 0
        %297 = vmatprep.subr.mxu0 0.0
        %298 = vmatpush1.msra.mxu0 %v282
        %299 = vmatprep.subr.mxu0 0.0
        %300 = vmatpush1.msra.mxu0 %v283
        %301 = vmatprep.subr.mxu0 0.0
        %302 = vmatpush1.msra.mxu0 %v284
        %303 = vmatprep.subr.mxu0 0.0
        %304 = vmatpush1.msra.mxu0 %v285
        %305 = vmatprep.subr.mxu0 0.0
        %306 = vmatpush1.msra.mxu0 0.0
        %307 = vmatprep.subr.mxu0 0.0
        %308 = vmatpush1.msra.mxu0 0.0
        %309 = vmatprep.subr.mxu0 0.0
        %310 = vmatpush1.msra.mxu0 0.0
        %311 = vmatprep.subr.mxu0 0.0
        %312 = vmatpush1.msra.mxu0 0.0
        %313 = vmatprep.subr.mxu0 0.0
        %314 = vmatpush1.msra.mxu0 0.0
        %315 = vmatprep.subr.mxu0 0.0
        %316 = vmatpush1.msra.mxu0 0.0
        %317 = vmatprep.subr.mxu0 0.0
        %318 = vmatpush1.msra.mxu0 0.0
        %319 = vmatprep.subr.mxu0 0.0
        %320 = vmatpush1.msra.mxu0 0.0
        %321 = vmatprep.subr.mxu0 0.0
        %322 = vmatpush1.msra.mxu0 0.0
        %323 = vmatprep.subr.mxu0 0.0
        %324 = vmatpush1.msra.mxu0 0.0
        %325 = vmatprep.subr.mxu0 0.0
        %326 = vmatpush1.msra.mxu0 0.0
        %327 = vmatprep.subr.mxu0 0.0
        %328 = vmatpush1.msra.mxu0 0.0
        %329 = vmatprep.subr.mxu0 0.0
        %330 = vmatpush1.msra.mxu0 0.0
        %331 = vmatprep.subr.mxu0 0.0
        %332 = vmatpush1.msra.mxu0 0.0
        %333 = vmatprep.subr.mxu0 0.0
        %334 = vmatpush1.msra.mxu0 0.0
        %335 = vmatprep.subr.mxu0 0.0
        %336 = vmatpush1.msra.mxu0 0.0
        %337 = vmatprep.subr.mxu0 0.0
        %338 = vmatpush1.msra.mxu0 0.0
        %339 = vmatprep.subr.mxu0 0.0
        %340 = vmatpush1.msra.mxu0 0.0
        %341 = vmatprep.subr.mxu0 0.0
        %342 = vmatpush1.msra.mxu0 0.0
        %343 = vmatprep.subr.mxu0 0.0
        %344 = vmatpush1.msra.mxu0 0.0
        %345 = vmatprep.subr.mxu0 0.0
        %346 = vmatpush1.msra.mxu0 0.0
        %347 = vmatprep.subr.mxu0 0.0
        %348 = vmatpush1.msra.mxu0 0.0
        %349 = vmatprep.subr.mxu0 0.0
        %350 = vmatpush1.msra.mxu0 0.0
        %351 = vmatprep.subr.mxu0 0.0
        %352 = vmatpush1.msra.mxu0 0.0
        %353 = vmatprep.subr.mxu0 0.0
        %354 = vmatpush1.msra.mxu0 0.0
        %355 = vmatprep.subr.mxu0 0.0
        %356 = vmatpush1.msra.mxu0 0.0
        %357 = vmatprep.subr.mxu0 0.0
        %358 = vmatpush1.msra.mxu0 0.0
        %359 = vmatprep.subr.mxu0 0.0
        %360 = vmatpush1.msra.mxu0 0.0
        %361 = vmatprep.mubr.f32.mxu0 0.0
        %362 = vmatmul.mubr.f32.gmra.mrb[0].mxu0 %v295
        %v363 = vpop.f32.mrb[0].mxu0
        %v364 = vadd.f32 %v291, %v363
        %v365 = vpop.f32.mrb[0].mxu0
        %366 = vdwg.mxu0
        %v367 = vmax.f32 %v364, 0.0
        %v368 = vld [vmem:[%s3] sm:$0xff]
        %v369 = vld [vmem:[%s3 + $0x8] sm:$0xff]
        %v370 = vld [vmem:[%s3 + $0x10] sm:$0xff]
        %v371 = vld [vmem:[%s3 + $0x18] sm:$0xff]
        %v372 = vld [vmem:[%s4] sm:$0xff]
        %v373 = vld [vmem:[%s4 + $0x8] sm:$0xff]
        %v374 = vld [vmem:[%s4 + $0x10] sm:$0xff]
        %v375 = vld [vmem:[%s4 + $0x18] sm:$0xff]
        %377 = vset.pattern.permute.xlu0 0
        %378 = vperm.xlu0 %377, %v372
        %v379 = vpop.permute.xlu0 %378
        %382 = vset.pattern.permute.xlu0 0
        %383 = vperm.xlu0 %382, %v373
        %v384 = vpop.permute.xlu0 %383
        %387 = vset.pattern.permute.xlu0 0
        %388 = vperm.xlu0 %387, %v374
        %v389 = vpop.permute.xlu0 %388
        %392 = vset.pattern.permute.xlu0 0
        %393 = vperm.xlu0 %392, %v375
        %v394 = vpop.permute.xlu0 %393
        %vm396 = vcmask 15360
        %v398 = vsel %vm396, %v368, 0
        %v401 = vsel %vm396, %v369, 0
        %v404 = vsel %vm396, %v370, 0
        %v407 = vsel %vm396, %v371, 0
        %vm409 = vcmask 1041408
        %v411 = vsel %vm409, %v367, 0
        %413 = vmatprep.subr.mxu0 0.0
        %414 = vmatpush1.msra.mxu0 %v411
        %415 = vmatprep.subr.mxu0 0.0
        %416 = vmatpush1.msra.mxu0 0.0
        %417 = vmatprep.subr.mxu0 0.0
        %418 = vmatpush1.msra.mxu0 0.0
        %419 = vmatprep.subr.mxu0 0.0
        %420 = vmatpush1.msra.mxu0 0.0
        %421 = vmatprep.subr.mxu0 0.0
        %422 = vmatpush1.msra.mxu0 0.0
        %423 = vmatprep.subr.mxu0 0.0
        %424 = vmatpush1.msra.mxu0 0.0
        %425 = vmatprep.subr.mxu0 0.0
        %426 = vmatpush1.msra.mxu0 0.0
        %427 = vmatprep.subr.mxu0 0.0
        %428 = vmatpush1.msra.mxu0 0.0
        %429 = vmatprep.subr.mxu0 0.0
        %430 = vmatpush1.msra.mxu0 0.0
        %431 = vmatprep.subr.mxu0 0.0
        %432 = vmatpush1.msra.mxu0 0.0
        %433 = vmatprep.subr.mxu0 0.0
        %434 = vmatpush1.msra.mxu0 0.0
        %435 = vmatprep.subr.mxu0 0.0
        %436 = vmatpush1.msra.mxu0 0.0
        %437 = vmatprep.subr.mxu0 0.0
        %438 = vmatpush1.msra.mxu0 0.0
        %439 = vmatprep.subr.mxu0 0.0
        %440 = vmatpush1.msra.mxu0 0.0
        %441 = vmatprep.subr.mxu0 0.0
        %442 = vmatpush1.msra.mxu0 0.0
        %443 = vmatprep.subr.mxu0 0.0
        %444 = vmatpush1.msra.mxu0 0.0
        %445 = vmatprep.subr.mxu0 0.0
        %446 = vmatpush1.msra.mxu0 0.0
        %447 = vmatprep.subr.mxu0 0.0
        %448 = vmatpush1.msra.mxu0 0.0
        %449 = vmatprep.subr.mxu0 0.0
        %450 = vmatpush1.msra.mxu0 0.0
        %451 = vmatprep.subr.mxu0 0.0
        %452 = vmatpush1.msra.mxu0 0.0
        %453 = vmatprep.subr.mxu0 0.0
        %454 = vmatpush1.msra.mxu0 0.0
        %455 = vmatprep.subr.mxu0 0.0
        %456 = vmatpush1.msra.mxu0 0.0
        %457 = vmatprep.subr.mxu0 0.0
        %458 = vmatpush1.msra.mxu0 0.0
        %459 = vmatprep.subr.mxu0 0.0
        %460 = vmatpush1.msra.mxu0 0.0
        %461 = vmatprep.subr.mxu0 0.0
        %462 = vmatpush1.msra.mxu0 0.0
        %463 = vmatprep.subr.mxu0 0.0
        %464 = vmatpush1.msra.mxu0 0.0
        %465 = vmatprep.subr.mxu0 0.0
        %466 = vmatpush1.msra.mxu0 0.0
        %467 = vmatprep.subr.mxu0 0.0
        %468 = vmatpush1.msra.mxu0 0.0
        %469 = vmatprep.subr.mxu0 0.0
        %470 = vmatpush1.msra.mxu0 0.0
        %471 = vmatprep.subr.mxu0 0.0
        %472 = vmatpush1.msra.mxu0 0.0
        %473 = vmatprep.subr.mxu0 0.0
        %474 = vmatpush1.msra.mxu0 0.0
        %475 = vmatprep.subr.mxu0 0.0
        %476 = vmatpush1.msra.mxu0 0.0
        %477 = vmatprep.mubr.f32.mxu0 0.0
        %478 = vmatmul.mubr.f32.gmra.mrb[0].mxu0 %v398
        %v479 = vpop.f32.mrb[0].mxu0
        %v480 = vadd.f32 %v379, %v479
        %v481 = vpop.f32.mrb[0].mxu0
        %482 = vmatprep.mubr.f32.mxu0 0.0
        %483 = vmatmul.mubr.f32.gmra.mrb[0].mxu0 %v401
        %v484 = vpop.f32.mrb[0].mxu0
        %v485 = vadd.f32 %v384, %v484
        %v486 = vpop.f32.mrb[0].mxu0
        %487 = vmatprep.mubr.f32.mxu0 0.0
        %488 = vmatmul.mubr.f32.gmra.mrb[0].mxu0 %v404
        %v489 = vpop.f32.mrb[0].mxu0
        %v490 = vadd.f32 %v389, %v489
        %v491 = vpop.f32.mrb[0].mxu0
        %492 = vmatprep.mubr.f32.mxu0 0.0
        %493 = vmatmul.mubr.f32.gmra.mrb[0].mxu0 %v407
        %v494 = vpop.f32.mrb[0].mxu0
        %v495 = vadd.f32 %v394, %v494
        %v496 = vpop.f32.mrb[0].mxu0
        %497 = vdwg.mxu0
        %v498 = vsel %vm396, %v480, 0.0
        %499 = vadd.xlane.f32.xlu0 %v498
        %v500 = vpop.xlane.xlu0 %499
        %v501 = vsel %vm396, %v485, 0.0
        %502 = vadd.xlane.f32.xlu0 %v501
        %v503 = vpop.xlane.xlu0 %502
        %v504 = vsel %vm396, %v490, 0.0
        %505 = vadd.xlane.f32.xlu0 %v504
        %v506 = vpop.xlane.xlu0 %505
        %v507 = vsel %vm396, %v495, 0.0
        %508 = vadd.xlane.f32.xlu0 %v507
        %v509 = vpop.xlane.xlu0 %508
        %v510 = vxor.u32 %v500, 2147483648
        %v511 = vxor.u32 %v503, 2147483648
        %v512 = vxor.u32 %v506, 2147483648
        %v513 = vxor.u32 %v509, 2147483648
        %v514 = vmul.f32 %v510, 1.442695
        %v515 = vpow.pop %v514
        %v516 = vmul.f32 %v511, 1.442695
        %v517 = vpow.pop %v516
        %v518 = vmul.f32 %v512, 1.442695
        %v519 = vpow.pop %v518
        %v520 = vmul.f32 %v513, 1.442695
        %v521 = vpow.pop %v520
        %v522 = vadd.f32 %v515, 1.0
        %v523 = vadd.f32 %v517, 1.0
        %v524 = vadd.f32 %v519, 1.0
        %v525 = vadd.f32 %v521, 1.0
        %v526 = vrcp.pop %v522
        %v527 = vmul.f32 1.0, %v526
        %v528 = vrcp.pop %v523
        %v529 = vmul.f32 1.0, %v528
        %v530 = vrcp.pop %v524
        %v531 = vmul.f32 1.0, %v530
        %v532 = vrcp.pop %v525
        %v533 = vmul.f32 1.0, %v532
        %v534 = vmul.f32 %v243, %v527
        %v535 = vmul.f32 %v244, %v527
        %v536 = vmul.f32 %v245, %v529
        %v537 = vmul.f32 %v246, %v529
        %v538 = vmul.f32 %v247, %v531
        %v539 = vmul.f32 %v248, %v531
        %v540 = vmul.f32 %v249, %v533
        %v541 = vmul.f32 %v250, %v533
        %542 = vst [vmem:[%s242] sm:$0xff] %v534
        %543 = vst [vmem:[%s242 + $0x8] sm:$0xff] %v535
        %544 = vst [vmem:[%s242 + $0x10] sm:$0xff] %v536
        %545 = vst [vmem:[%s242 + $0x18] sm:$0xff] %v537
        %546 = vst [vmem:[%s242 + $0x20] sm:$0xff] %v538
        %547 = vst [vmem:[%s242 + $0x28] sm:$0xff] %v539
        %548 = vst [vmem:[%s242 + $0x30] sm:$0xff] %v540
        %549 = vst [vmem:[%s242 + $0x38] sm:$0xff] %v541
        %s550 = sand.u32 %s140, 1
        %s551 = scalar_lea.sflag [#allocation4], %s550
        %s552 = sand.u32 %s140, 1
        %s553 = smul.addr %s552, 64
        %s554 = scalar_lea.vmem [#allocation5], %s553
        // Predicated region
        $region45: #{tpu_custom_call.1} parent=39 // pred_check
          %p555 = pneg %p150
        $region46: #{tpu_custom_call.1} parent=39 // pred_check_branch
          %557 = sbr.rel (%p555) target = $region48
        $region47: #{tpu_custom_call.1} parent=39 // pred_region
          %s559 = ssub.s32 1024, 1024
          %560 = vsyncadd %s551, %s559
          %s561 = smul.addr %s22, 8
          %s562 = smul.addr %s561, 128
          %s563 = scalar_lea.hbm %s5, %s562
          %s564 = sshll.u32 %s554, 4
          %s565 = int_to_ptr.vmem [resolvable:$true] %s564
          %570 = dma.vmem_to_hbm [thread:$0]  %s565, 1024, %s563, %s551, 256, 256, 16
        $region48: #{tpu_custom_call.1} parent=39 // pred_fallthru
          _
      $region40: #{tpu_custom_call.1} parent=5 // pred_fallthru
        _
      %p571 = scmp.le.s32.totalorder 2, %s17
      // Predicated region
      $region49: #{tpu_custom_call.1} parent=5 // pred_check
        %p572 = pneg %p571
      $region50: #{tpu_custom_call.1} parent=5 // pred_check_branch
        %574 = sbr.rel (%p572) target = $region52
      $region51: #{tpu_custom_call.1} parent=5 // pred_region
        %s575 = ssub.s32 %s17, 2
        // Predicated region
        $region53: #{tpu_custom_call.1} parent=51 // pred_check
          %p576 = pneg %p156
        $region54: #{tpu_custom_call.1} parent=51 // pred_check_branch
          %578 = sbr.rel (%p576) target = $region56
        $region55: #{tpu_custom_call.1} parent=51 // pred_region
          %s579 = sand.u32 %s141, 1
          %s580 = scalar_lea.sflag [#allocation4], %s579
          %s581 = sand.u32 %s141, 1
          %s582 = smul.addr %s581, 64
          %s583 = scalar_lea.vmem [#allocation5], %s582
          %584 = dma.done %s580, 1024
        $region56: #{tpu_custom_call.1} parent=51 // pred_fallthru
          _
      $region52: #{tpu_custom_call.1} parent=5 // pred_fallthru
        _
    $region6: #{tpu_custom_call.1} parent=1 // loop_footer
      %s21 = sadd.s32 1, %s17
    $region7: #{tpu_custom_call.1} parent=1 // loop_footer_branch
      %16 = sbr.rel target = $region3
    $region8: #{tpu_custom_call.1} parent=1 // loop_exit
      _
    %585 = vsyncpa [#allocation3], 1
    %s586 = scalar_lea.sflag [#allocation3], 1
    %587 = vsyncpa %s586, 1
    %588 = vsyncpa [#allocation4], 1
    %s589 = scalar_lea.sflag [#allocation4], 1
    %590 = vsyncpa %s589, 1

</llo_original>
